<compile_context>
chip_gen: v6e
topology: v6e:2x2x1
jax: 0.10.0
libtpu: 0.0.40
codegen_flags: <defaults>
</compile_context>

<pallas_src>
import jax
import jax.numpy as jnp
from jax.experimental import pallas as pl
from jax.experimental.pallas import tpu as pltpu

HIDDEN = 512          # CLIP text-embedding width (classifier in_features=512)
N_OUTPUT = 8          # classifier output classes (n_output)
VOCAB = 64            # synthetic vocab for the stand-in token embedding
SEQ = 8               # synthetic sequence length
BATCH = 2


def _clip_text_classifier_kernel(tok_ref, emb_ref, wf_ref, bias_ref, out_ref):
    """Fused encode_text stand-in (gather + mean-pool + projection) + classifier.

    tok_ref:  [B, SEQ]        int32 token ids                        (VMEM)
    emb_ref:  [VOCAB, HIDDEN] f32 token-embedding table              (VMEM)
    wf_ref:   [HIDDEN, N_OUT] f32 fused (w_proj @ w_cls) / SEQ       (VMEM)
    bias_ref: [1, N_OUT]      f32 classifier bias                    (VMEM)
    out_ref:  [B, N_OUT]      f32 logits                             (VMEM)
    """
    b, seq = tok_ref.shape
    vocab = emb_ref.shape[0]

    tok = tok_ref[...]                                             # [B, SEQ] int32
    v_iota = jax.lax.broadcasted_iota(jnp.int32, (b, vocab), 1)    # [B, VOCAB]

    # One-hot token counts per batch row (gather-as-matmul; SEQ is tiny & static,
    # so this unrolls into a handful of VPU compare/adds).
    counts = jnp.zeros((b, vocab), dtype=jnp.float32)
    for s in range(seq):
        counts = counts + (tok[:, s:s + 1] == v_iota).astype(jnp.float32)

    # sum_s embed_table[tok[b, s], :]  -> [B, HIDDEN]  (MXU, K=VOCAB; exact since
    # counts are small integers represented exactly in f32).
    pooled_sum = jnp.dot(counts, emb_ref[...], preferred_element_type=jnp.float32)

    # The 1/SEQ mean-pool scale, text projection and classifier weight are all folded
    # into wf_ref by the wrapper, so a single [B,512]x[512,N] matmul + bias finishes.
    # NOTE: N_OUTPUT=8 < 128 lanes -> masked store (negligible at this size); pad the
    # fused weight / output to a multiple of 128 and slice in the wrapper if
    # n_output or batch ever grows.
    out_ref[...] = (
        jnp.dot(pooled_sum, wf_ref[...], preferred_element_type=jnp.float32)
        + bias_ref[...]
    )


def clip_text_classifier_forward(token_ids, embed_table, w_proj, w_cls, b_cls):
    """Forward pass matching CLIP_text_classifier.forward semantics.

    token_ids:   [B, SEQ] int32
    embed_table: [VOCAB, HIDDEN] f32
    w_proj:      [HIDDEN, HIDDEN] f32   (stand-in for CLIP text_projection)
    w_cls:       [HIDDEN, N_OUTPUT] f32 (== torch Linear.weight.T)
    b_cls:       [N_OUTPUT] f32
    returns:     [B, N_OUTPUT] f32 logits
    """
    batch, seq = token_ids.shape
    n_out = w_cls.shape[1]

    # Static-weight fold (exact for a linear chain):
    #   mean(emb) @ w_proj @ w_cls == sum(emb) @ ((w_proj @ w_cls) / SEQ)
    # Under jit this folds to a constant / runs once; in a real deployment it would be
    # precomputed offline, removing ~1 MiB of HBM traffic per call.
    w_fused = (w_proj @ w_cls) * (1.0 / seq)        # [HIDDEN, n_out]
    bias_2d = b_cls.reshape(1, n_out)

    return pl.pallas_call(
        _clip_text_classifier_kernel,
        out_shape=jax.ShapeDtypeStruct((batch, n_out), jnp.float32),
        # No grid: single invocation, every operand single-buffered in VMEM.
        in_specs=[
            pl.BlockSpec(memory_space=pltpu.MemorySpace.VMEM),  # token_ids  [B, SEQ]
            pl.BlockSpec(memory_space=pltpu.MemorySpace.VMEM),  # embed_table[V, 512]
            pl.BlockSpec(memory_space=pltpu.MemorySpace.VMEM),  # fused W    [512, N]
            pl.BlockSpec(memory_space=pltpu.MemorySpace.VMEM),  # bias       [1, N]
        ],
        out_specs=pl.BlockSpec(memory_space=pltpu.MemorySpace.VMEM),
    )(token_ids, embed_table, w_fused, bias_2d)


def _reference(token_ids, embed_table, w_proj, w_cls, b_cls):
    emb = jnp.take(embed_table, token_ids, axis=0)   # [B, SEQ, HIDDEN]
    pooled = jnp.mean(emb, axis=1)                   # [B, HIDDEN]
    feats = pooled @ w_proj
    return feats @ w_cls + b_cls[None, :]


if __name__ == "__main__":
    key = jax.random.PRNGKey(0)
    k_tok, k_emb, k_proj, k_w, k_b = jax.random.split(key, 5)

    token_ids = jax.random.randint(k_tok, (BATCH, SEQ), 0, VOCAB, dtype=jnp.int32)
    embed_table = jax.random.normal(k_emb, (VOCAB, HIDDEN), dtype=jnp.float32) * 0.02
    w_proj = jax.random.normal(k_proj, (HIDDEN, HIDDEN), dtype=jnp.float32) * 0.02
    # torch.nn.Linear(512, n_output): weight [n_out, 512], bias [n_out].
    # We store the transposed weight [512, n_out] for a lane-friendly matmul.
    w_cls = jax.random.normal(k_w, (HIDDEN, N_OUTPUT), dtype=jnp.float32) * 0.02
    b_cls = jax.random.normal(k_b, (N_OUTPUT,), dtype=jnp.float32) * 0.02

    logits = clip_text_classifier_forward(token_ids, embed_table, w_proj, w_cls, b_cls)
    logits = jax.block_until_ready(logits)

    ref = _reference(token_ids, embed_table, w_proj, w_cls, b_cls)
    assert logits.shape == (BATCH, N_OUTPUT)
    assert jnp.allclose(logits, ref, atol=1e-4, rtol=1e-4), "mismatch vs reference"

    print("KERNEL_OK")
</pallas_src>

<mosaic_0001>
module attributes {stable_mosaic.version = 11 : i64} {
  func.func @_clip_text_classifier_kernel(%arg0: memref<2x8xi32, #tpu.memory_space<vmem>>, %arg1: memref<64x512xf32, #tpu.memory_space<vmem>>, %arg2: memref<512x8xf32, #tpu.memory_space<vmem>>, %arg3: memref<1x8xf32, #tpu.memory_space<vmem>>, %arg4: memref<2x8xf32, #tpu.memory_space<vmem>>) attributes {dimension_semantics = [], scalar_prefetch = 0 : i64, scratch_operands = 0 : i64, tpu.core_type = #tpu.core_type<tc>} {
    %c0 = arith.constant 0 : index
    %c0_0 = arith.constant 0 : index
    %0 = vector.load %arg0[%c0, %c0_0] : memref<2x8xi32, #tpu.memory_space<vmem>>, vector<2x8xi32>
    %1 = tpu.iota {dimensions = array<i32: 1>} : vector<2x64xi32>
    %cst = arith.constant 0.000000e+00 : f32
    %2 = vector.broadcast %cst : f32 to vector<2x64xf32>
    %3 = vector.extract_strided_slice %0 {offsets = [0, 0], sizes = [2, 1], strides = [1, 1]} : vector<2x8xi32> to vector<2x1xi32>
    %4 = vector.broadcast %3 : vector<2x1xi32> to vector<2x64xi32>
    %5 = arith.cmpi eq, %4, %1 : vector<2x64xi32>
    %6 = arith.extui %5 : vector<2x64xi1> to vector<2x64xi32>
    %7 = arith.sitofp %6 : vector<2x64xi32> to vector<2x64xf32>
    %8 = arith.addf %2, %7 : vector<2x64xf32>
    %9 = vector.extract_strided_slice %0 {offsets = [0, 1], sizes = [2, 1], strides = [1, 1]} : vector<2x8xi32> to vector<2x1xi32>
    %10 = vector.broadcast %9 : vector<2x1xi32> to vector<2x64xi32>
    %11 = arith.cmpi eq, %10, %1 : vector<2x64xi32>
    %12 = arith.extui %11 : vector<2x64xi1> to vector<2x64xi32>
    %13 = arith.sitofp %12 : vector<2x64xi32> to vector<2x64xf32>
    %14 = arith.addf %8, %13 : vector<2x64xf32>
    %15 = vector.extract_strided_slice %0 {offsets = [0, 2], sizes = [2, 1], strides = [1, 1]} : vector<2x8xi32> to vector<2x1xi32>
    %16 = vector.broadcast %15 : vector<2x1xi32> to vector<2x64xi32>
    %17 = arith.cmpi eq, %16, %1 : vector<2x64xi32>
    %18 = arith.extui %17 : vector<2x64xi1> to vector<2x64xi32>
    %19 = arith.sitofp %18 : vector<2x64xi32> to vector<2x64xf32>
    %20 = arith.addf %14, %19 : vector<2x64xf32>
    %21 = vector.extract_strided_slice %0 {offsets = [0, 3], sizes = [2, 1], strides = [1, 1]} : vector<2x8xi32> to vector<2x1xi32>
    %22 = vector.broadcast %21 : vector<2x1xi32> to vector<2x64xi32>
    %23 = arith.cmpi eq, %22, %1 : vector<2x64xi32>
    %24 = arith.extui %23 : vector<2x64xi1> to vector<2x64xi32>
    %25 = arith.sitofp %24 : vector<2x64xi32> to vector<2x64xf32>
    %26 = arith.addf %20, %25 : vector<2x64xf32>
    %27 = vector.extract_strided_slice %0 {offsets = [0, 4], sizes = [2, 1], strides = [1, 1]} : vector<2x8xi32> to vector<2x1xi32>
    %28 = vector.broadcast %27 : vector<2x1xi32> to vector<2x64xi32>
    %29 = arith.cmpi eq, %28, %1 : vector<2x64xi32>
    %30 = arith.extui %29 : vector<2x64xi1> to vector<2x64xi32>
    %31 = arith.sitofp %30 : vector<2x64xi32> to vector<2x64xf32>
    %32 = arith.addf %26, %31 : vector<2x64xf32>
    %33 = vector.extract_strided_slice %0 {offsets = [0, 5], sizes = [2, 1], strides = [1, 1]} : vector<2x8xi32> to vector<2x1xi32>
    %34 = vector.broadcast %33 : vector<2x1xi32> to vector<2x64xi32>
    %35 = arith.cmpi eq, %34, %1 : vector<2x64xi32>
    %36 = arith.extui %35 : vector<2x64xi1> to vector<2x64xi32>
    %37 = arith.sitofp %36 : vector<2x64xi32> to vector<2x64xf32>
    %38 = arith.addf %32, %37 : vector<2x64xf32>
    %39 = vector.extract_strided_slice %0 {offsets = [0, 6], sizes = [2, 1], strides = [1, 1]} : vector<2x8xi32> to vector<2x1xi32>
    %40 = vector.broadcast %39 : vector<2x1xi32> to vector<2x64xi32>
    %41 = arith.cmpi eq, %40, %1 : vector<2x64xi32>
    %42 = arith.extui %41 : vector<2x64xi1> to vector<2x64xi32>
    %43 = arith.sitofp %42 : vector<2x64xi32> to vector<2x64xf32>
    %44 = arith.addf %38, %43 : vector<2x64xf32>
    %45 = vector.extract_strided_slice %0 {offsets = [0, 7], sizes = [2, 1], strides = [1, 1]} : vector<2x8xi32> to vector<2x1xi32>
    %46 = vector.broadcast %45 : vector<2x1xi32> to vector<2x64xi32>
    %47 = arith.cmpi eq, %46, %1 : vector<2x64xi32>
    %48 = arith.extui %47 : vector<2x64xi1> to vector<2x64xi32>
    %49 = arith.sitofp %48 : vector<2x64xi32> to vector<2x64xf32>
    %50 = arith.addf %44, %49 : vector<2x64xf32>
    %c0_1 = arith.constant 0 : index
    %c0_2 = arith.constant 0 : index
    %51 = vector.load %arg1[%c0_1, %c0_2] : memref<64x512xf32, #tpu.memory_space<vmem>>, vector<64x512xf32>
    %cst_3 = arith.constant dense<0.000000e+00> : vector<2x512xf32>
    %52 = tpu.matmul %50, %51, %cst_3 {dimension_numbers = #tpu.dot_dimension_numbers<[1], [0], [0], [1], [0, 0, 1, 1], [], []>} : vector<2x64xf32>, vector<64x512xf32>, vector<2x512xf32> -> vector<2x512xf32>
    %c0_4 = arith.constant 0 : index
    %c0_5 = arith.constant 0 : index
    %53 = vector.load %arg2[%c0_4, %c0_5] : memref<512x8xf32, #tpu.memory_space<vmem>>, vector<512x8xf32>
    %cst_6 = arith.constant dense<0.000000e+00> : vector<2x8xf32>
    %54 = tpu.matmul %52, %53, %cst_6 {dimension_numbers = #tpu.dot_dimension_numbers<[1], [0], [0], [1], [0, 0, 1, 1], [], []>} : vector<2x512xf32>, vector<512x8xf32>, vector<2x8xf32> -> vector<2x8xf32>
    %c0_7 = arith.constant 0 : index
    %c0_8 = arith.constant 0 : index
    %55 = vector.load %arg3[%c0_7, %c0_8] : memref<1x8xf32, #tpu.memory_space<vmem>>, vector<1x8xf32>
    %56 = vector.broadcast %55 : vector<1x8xf32> to vector<2x8xf32>
    %57 = arith.addf %54, %56 : vector<2x8xf32>
    %c0_9 = arith.constant 0 : index
    %c0_10 = arith.constant 0 : index
    %58 = vector.load %arg4[%c0_9, %c0_10] : memref<2x8xf32, #tpu.memory_space<vmem>>, vector<2x8xf32>
    tpu.vector_store %arg4[%c0_9, %c0_10], %57 {strides = array<i32>} : memref<2x8xf32, #tpu.memory_space<vmem>>, vector<2x8xf32>,
    return
  }
}

</mosaic_0001>

<llo_original>
// kernel: tpu_custom_call.1
$region0: #{tpu_custom_call.1}
  #allocation0 [shape = 'u32[]', space=smem, size = 0x4, offset = 0x4, fixed_abs, tag = 'smem constant byte address 0x4 - core index']
  #allocation1 [shape = 'u32[144,128]{1,0:T(1,128)}', space=vmem, size = 0x12000, scoped, tag = 'internal scratch']
  %s0 = inlined_call_operand.vmem [shape: s32[2,8], index: 0, kind: input, shape index: {}]
  %s1 = inlined_call_operand.vmem [shape: f32[64,512], index: 1, kind: input, shape index: {}]
  %s2 = inlined_call_operand.vmem [shape: f32[512,8], index: 2, kind: input, shape index: {}]
  %s3 = inlined_call_operand.vmem [shape: f32[1,8], index: 3, kind: input, shape index: {}]
  %s4 = inlined_call_operand.hbm [shape: f32[2,8], index: 4, kind: output, shape index: {}]
  %s5 = sld [smem:[#allocation0]]
  $region26: #{tpu_custom_call.1} parent=0
    _
  %s7 = ssub.s32 1, %s5
  %s8 = scalar_select 0, %s7, %s5
  $region1: #{tpu_custom_call.1} parent=0
    #allocation2 [shape = 'u8[1024]{0}', space=vmem, size = 0x400, scoped, tag = 'output window, operand 0, single buffered']
    #allocation3 [shape = 's32[1]{0}', space=sflag, size = 0x4, scoped, tag = 'scoped memory for tpu_custom_call.1']
    %9 = vsyncpa [#allocation3], 0
    // Predicated region
    $region2: #{tpu_custom_call.1} parent=1 // pred_check
      _
    $region3: #{tpu_custom_call.1} parent=1 // pred_check_branch
      %11 = sbr.rel (0) target = $region5
    $region4: #{tpu_custom_call.1} parent=1 // pred_region
      _
    $region5: #{tpu_custom_call.1} parent=1 // pred_fallthru
      _
    // Predicated region
    $region6: #{tpu_custom_call.1} parent=1 // pred_check
      _
    $region7: #{tpu_custom_call.1} parent=1 // pred_check_branch
      %13 = sbr.rel (0) target = $region9
    $region8: #{tpu_custom_call.1} parent=1 // pred_region
      _
    $region9: #{tpu_custom_call.1} parent=1 // pred_fallthru
      _
    // Predicated region
    $region10: #{tpu_custom_call.1} parent=1 // pred_check
      _
    $region11: #{tpu_custom_call.1} parent=1 // pred_check_branch
      %15 = sbr.rel (0) target = $region13
    $region12: #{tpu_custom_call.1} parent=1 // pred_region
      _
    $region13: #{tpu_custom_call.1} parent=1 // pred_fallthru
      _
    // Predicated region
    $region14: #{tpu_custom_call.1} parent=1 // pred_check
      _
    $region15: #{tpu_custom_call.1} parent=1 // pred_check_branch
      %17 = sbr.rel (0) target = $region17
    $region16: #{tpu_custom_call.1} parent=1 // pred_region
      _
    $region17: #{tpu_custom_call.1} parent=1 // pred_fallthru
      _
    %v18 = vld [vmem:[%s0] sm:$0x3]
    %v19 = vlaneseq
    %v20 = vand.u32 %v19, 127
    %21 = vset.pattern.permute.xlu0 0
    %22 = vperm.xlu0 %21, %v18
    %v23 = vpop.permute.xlu0 %22
    %vm24 = vcmp.eq.s32.totalorder %v23, %v20
    %v25 = vsel %vm24, 1, 0
    %v26 = vcvt.s32.f32 %v25
    %v27 = vadd.f32 %v26, 0.0
    %28 = vset.pattern.permute.xlu0 1
    %29 = vperm.xlu0 %28, %v18
    %v30 = vpop.permute.xlu0 %29
    %vm31 = vcmp.eq.s32.totalorder %v30, %v20
    %v32 = vsel %vm31, 1, 0
    %v33 = vcvt.s32.f32 %v32
    %v34 = vadd.f32 %v27, %v33
    %35 = vset.pattern.permute.xlu0 2
    %36 = vperm.xlu0 %35, %v18
    %v37 = vpop.permute.xlu0 %36
    %vm38 = vcmp.eq.s32.totalorder %v37, %v20
    %v39 = vsel %vm38, 1, 0
    %v40 = vcvt.s32.f32 %v39
    %v41 = vadd.f32 %v34, %v40
    %42 = vset.pattern.permute.xlu0 3
    %43 = vperm.xlu0 %42, %v18
    %v44 = vpop.permute.xlu0 %43
    %vm45 = vcmp.eq.s32.totalorder %v44, %v20
    %v46 = vsel %vm45, 1, 0
    %v47 = vcvt.s32.f32 %v46
    %v48 = vadd.f32 %v41, %v47
    %49 = vset.pattern.permute.xlu0 4
    %50 = vperm.xlu0 %49, %v18
    %v51 = vpop.permute.xlu0 %50
    %vm52 = vcmp.eq.s32.totalorder %v51, %v20
    %v53 = vsel %vm52, 1, 0
    %v54 = vcvt.s32.f32 %v53
    %v55 = vadd.f32 %v48, %v54
    %56 = vset.pattern.permute.xlu0 5
    %57 = vperm.xlu0 %56, %v18
    %v58 = vpop.permute.xlu0 %57
    %vm59 = vcmp.eq.s32.totalorder %v58, %v20
    %v60 = vsel %vm59, 1, 0
    %v61 = vcvt.s32.f32 %v60
    %v62 = vadd.f32 %v55, %v61
    %63 = vset.pattern.permute.xlu0 6
    %64 = vperm.xlu0 %63, %v18
    %v65 = vpop.permute.xlu0 %64
    %vm66 = vcmp.eq.s32.totalorder %v65, %v20
    %v67 = vsel %vm66, 1, 0
    %v68 = vcvt.s32.f32 %v67
    %v69 = vadd.f32 %v62, %v68
    %70 = vset.pattern.permute.xlu0 7
    %71 = vperm.xlu0 %70, %v18
    %v72 = vpop.permute.xlu0 %71
    %vm73 = vcmp.eq.s32.totalorder %v72, %v20
    %v74 = vsel %vm73, 1, 0
    %v75 = vcvt.s32.f32 %v74
    %v76 = vadd.f32 %v69, %v75
    %v77 = vld [vmem:[%s1] sm:$0xff]
    %v78 = vld [vmem:[%s1 + $0x8] sm:$0xff]
    %v79 = vld [vmem:[%s1 + $0x10] sm:$0xff]
    %v80 = vld [vmem:[%s1 + $0x18] sm:$0xff]
    %v81 = vld [vmem:[%s1 + $0x20] sm:$0xff]
    %v82 = vld [vmem:[%s1 + $0x28] sm:$0xff]
    %v83 = vld [vmem:[%s1 + $0x30] sm:$0xff]
    %v84 = vld [vmem:[%s1 + $0x38] sm:$0xff]
    %v85 = vld [vmem:[%s1 + $0x40] sm:$0xff]
    %v86 = vld [vmem:[%s1 + $0x48] sm:$0xff]
    %v87 = vld [vmem:[%s1 + $0x50] sm:$0xff]
    %v88 = vld [vmem:[%s1 + $0x58] sm:$0xff]
    %v89 = vld [vmem:[%s1 + $0x60] sm:$0xff]
    %v90 = vld [vmem:[%s1 + $0x68] sm:$0xff]
    %v91 = vld [vmem:[%s1 + $0x70] sm:$0xff]
    %v92 = vld [vmem:[%s1 + $0x78] sm:$0xff]
    %v93 = vld [vmem:[%s1 + $0x80] sm:$0xff]
    %v94 = vld [vmem:[%s1 + $0x88] sm:$0xff]
    %v95 = vld [vmem:[%s1 + $0x90] sm:$0xff]
    %v96 = vld [vmem:[%s1 + $0x98] sm:$0xff]
    %v97 = vld [vmem:[%s1 + $0xa0] sm:$0xff]
    %v98 = vld [vmem:[%s1 + $0xa8] sm:$0xff]
    %v99 = vld [vmem:[%s1 + $0xb0] sm:$0xff]
    %v100 = vld [vmem:[%s1 + $0xb8] sm:$0xff]
    %v101 = vld [vmem:[%s1 + $0xc0] sm:$0xff]
    %v102 = vld [vmem:[%s1 + $0xc8] sm:$0xff]
    %v103 = vld [vmem:[%s1 + $0xd0] sm:$0xff]
    %v104 = vld [vmem:[%s1 + $0xd8] sm:$0xff]
    %v105 = vld [vmem:[%s1 + $0xe0] sm:$0xff]
    %v106 = vld [vmem:[%s1 + $0xe8] sm:$0xff]
    %v107 = vld [vmem:[%s1 + $0xf0] sm:$0xff]
    %v108 = vld [vmem:[%s1 + $0xf8] sm:$0xff]
    %vm109 = vcmask 523264
    %v111 = vsel %vm109, %v76, 0
    %113 = vmatprep.subr.mxu0 0.0
    %114 = vmatpush1.msra.mxu0 0.0
    %115 = vmatprep.subr.mxu0 0.0
    %116 = vmatpush1.msra.mxu0 0.0
    %117 = vmatprep.subr.mxu0 0.0
    %118 = vmatpush1.msra.mxu0 0.0
    %119 = vmatprep.subr.mxu0 0.0
    %120 = vmatpush1.msra.mxu0 0.0
    %121 = vmatprep.subr.mxu0 0.0
    %122 = vmatpush1.msra.mxu0 0.0
    %123 = vmatprep.subr.mxu0 0.0
    %124 = vmatpush1.msra.mxu0 0.0
    %125 = vmatprep.subr.mxu0 0.0
    %126 = vmatpush1.msra.mxu0 0.0
    %127 = vmatprep.subr.mxu0 0.0
    %128 = vmatpush1.msra.mxu0 0.0
    %129 = vmatprep.subr.mxu0 %v106
    %130 = vmatpush1.msra.mxu0 %v105
    %131 = vmatprep.subr.mxu0 %v102
    %132 = vmatpush1.msra.mxu0 %v101
    %133 = vmatprep.subr.mxu0 %v98
    %134 = vmatpush1.msra.mxu0 %v97
    %135 = vmatprep.subr.mxu0 %v94
    %136 = vmatpush1.msra.mxu0 %v93
    %137 = vmatprep.subr.mxu0 %v90
    %138 = vmatpush1.msra.mxu0 %v89
    %139 = vmatprep.subr.mxu0 %v86
    %140 = vmatpush1.msra.mxu0 %v85
    %141 = vmatprep.subr.mxu0 %v82
    %142 = vmatpush1.msra.mxu0 %v81
    %143 = vmatprep.subr.mxu0 %v78
    %144 = vmatpush1.msra.mxu0 %v77
    %145 = vmatprep.subr.mxu0 0.0
    %146 = vmatpush2.msra.mxu0 0.0
    %147 = vmatprep.subr.mxu0 0.0
    %148 = vmatpush2.msra.mxu0 0.0
    %149 = vmatprep.subr.mxu0 0.0
    %150 = vmatpush2.msra.mxu0 0.0
    %151 = vmatprep.subr.mxu0 0.0
    %152 = vmatpush2.msra.mxu0 0.0
    %153 = vmatprep.subr.mxu0 0.0
    %154 = vmatpush2.msra.mxu0 0.0
    %155 = vmatprep.subr.mxu0 0.0
    %156 = vmatpush2.msra.mxu0 0.0
    %157 = vmatprep.subr.mxu0 0.0
    %158 = vmatpush2.msra.mxu0 0.0
    %159 = vmatprep.subr.mxu0 0.0
    %160 = vmatpush2.msra.mxu0 0.0
    %161 = vmatprep.subr.mxu0 0.0
    %162 = vmatpush2.msra.mxu0 0.0
    %163 = vmatprep.subr.mxu0 0.0
    %164 = vmatpush2.msra.mxu0 0.0
    %165 = vmatprep.subr.mxu0 0.0
    %166 = vmatpush2.msra.mxu0 0.0
    %167 = vmatprep.subr.mxu0 0.0
    %168 = vmatpush2.msra.mxu0 0.0
    %169 = vmatprep.subr.mxu0 0.0
    %170 = vmatpush2.msra.mxu0 0.0
    %171 = vmatprep.subr.mxu0 0.0
    %172 = vmatpush2.msra.mxu0 0.0
    %173 = vmatprep.subr.mxu0 0.0
    %174 = vmatpush2.msra.mxu0 0.0
    %175 = vmatprep.subr.mxu0 0.0
    %176 = vmatpush2.msra.mxu0 0.0
    %177 = vmatprep.mubr.f32.mxu0 0.0
    %178 = vmatmul.mubr.f32.gmra.mxu0 %v111
    %v179 = vpop.f32.mrf.mxu0
    %v180 = vadd.f32 0.0, %v179
    %v181 = vpop.f32.mrf.mxu0
    %v182 = vadd.f32 0.0, %v181
    %183 = vdwg.mxu0
    %184 = vmatprep.subr.mxu0 0.0
    %185 = vmatpush1.msra.mxu0 0.0
    %186 = vmatprep.subr.mxu0 0.0
    %187 = vmatpush1.msra.mxu0 0.0
    %188 = vmatprep.subr.mxu0 0.0
    %189 = vmatpush1.msra.mxu0 0.0
    %190 = vmatprep.subr.mxu0 0.0
    %191 = vmatpush1.msra.mxu0 0.0
    %192 = vmatprep.subr.mxu0 0.0
    %193 = vmatpush1.msra.mxu0 0.0
    %194 = vmatprep.subr.mxu0 0.0
    %195 = vmatpush1.msra.mxu0 0.0
    %196 = vmatprep.subr.mxu0 0.0
    %197 = vmatpush1.msra.mxu0 0.0
    %198 = vmatprep.subr.mxu0 0.0
    %199 = vmatpush1.msra.mxu0 0.0
    %200 = vmatprep.subr.mxu0 %v108
    %201 = vmatpush1.msra.mxu0 %v107
    %202 = vmatprep.subr.mxu0 %v104
    %203 = vmatpush1.msra.mxu0 %v103
    %204 = vmatprep.subr.mxu0 %v100
    %205 = vmatpush1.msra.mxu0 %v99
    %206 = vmatprep.subr.mxu0 %v96
    %207 = vmatpush1.msra.mxu0 %v95
    %208 = vmatprep.subr.mxu0 %v92
    %209 = vmatpush1.msra.mxu0 %v91
    %210 = vmatprep.subr.mxu0 %v88
    %211 = vmatpush1.msra.mxu0 %v87
    %212 = vmatprep.subr.mxu0 %v84
    %213 = vmatpush1.msra.mxu0 %v83
    %214 = vmatprep.subr.mxu0 %v80
    %215 = vmatpush1.msra.mxu0 %v79
    %216 = vmatprep.subr.mxu0 0.0
    %217 = vmatpush2.msra.mxu0 0.0
    %218 = vmatprep.subr.mxu0 0.0
    %219 = vmatpush2.msra.mxu0 0.0
    %220 = vmatprep.subr.mxu0 0.0
    %221 = vmatpush2.msra.mxu0 0.0
    %222 = vmatprep.subr.mxu0 0.0
    %223 = vmatpush2.msra.mxu0 0.0
    %224 = vmatprep.subr.mxu0 0.0
    %225 = vmatpush2.msra.mxu0 0.0
    %226 = vmatprep.subr.mxu0 0.0
    %227 = vmatpush2.msra.mxu0 0.0
    %228 = vmatprep.subr.mxu0 0.0
    %229 = vmatpush2.msra.mxu0 0.0
    %230 = vmatprep.subr.mxu0 0.0
    %231 = vmatpush2.msra.mxu0 0.0
    %232 = vmatprep.subr.mxu0 0.0
    %233 = vmatpush2.msra.mxu0 0.0
    %234 = vmatprep.subr.mxu0 0.0
    %235 = vmatpush2.msra.mxu0 0.0
    %236 = vmatprep.subr.mxu0 0.0
    %237 = vmatpush2.msra.mxu0 0.0
    %238 = vmatprep.subr.mxu0 0.0
    %239 = vmatpush2.msra.mxu0 0.0
    %240 = vmatprep.subr.mxu0 0.0
    %241 = vmatpush2.msra.mxu0 0.0
    %242 = vmatprep.subr.mxu0 0.0
    %243 = vmatpush2.msra.mxu0 0.0
    %244 = vmatprep.subr.mxu0 0.0
    %245 = vmatpush2.msra.mxu0 0.0
    %246 = vmatprep.subr.mxu0 0.0
    %247 = vmatpush2.msra.mxu0 0.0
    %248 = vmatprep.mubr.f32.mxu0 0.0
    %249 = vmatmul.mubr.f32.gmra.mxu0 %v111
    %v250 = vpop.f32.mrf.mxu0
    %v251 = vadd.f32 0.0, %v250
    %v252 = vpop.f32.mrf.mxu0
    %v253 = vadd.f32 0.0, %v252
    %254 = vdwg.mxu0
    %v255 = vld [vmem:[%s2] sm:$0xff]
    %v256 = vld [vmem:[%s2 + $0x8] sm:$0xff]
    %v257 = vld [vmem:[%s2 + $0x10] sm:$0xff]
    %v258 = vld [vmem:[%s2 + $0x18] sm:$0xff]
    %v259 = vld [vmem:[%s2 + $0x20] sm:$0xff]
    %v260 = vld [vmem:[%s2 + $0x28] sm:$0xff]
    %v261 = vld [vmem:[%s2 + $0x30] sm:$0xff]
    %v262 = vld [vmem:[%s2 + $0x38] sm:$0xff]
    %v263 = vld [vmem:[%s2 + $0x40] sm:$0xff]
    %v264 = vld [vmem:[%s2 + $0x48] sm:$0xff]
    %v265 = vld [vmem:[%s2 + $0x50] sm:$0xff]
    %v266 = vld [vmem:[%s2 + $0x58] sm:$0xff]
    %v267 = vld [vmem:[%s2 + $0x60] sm:$0xff]
    %v268 = vld [vmem:[%s2 + $0x68] sm:$0xff]
    %v269 = vld [vmem:[%s2 + $0x70] sm:$0xff]
    %v270 = vld [vmem:[%s2 + $0x78] sm:$0xff]
    %v271 = vld [vmem:[%s2 + $0x80] sm:$0xff]
    %v272 = vld [vmem:[%s2 + $0x88] sm:$0xff]
    %v273 = vld [vmem:[%s2 + $0x90] sm:$0xff]
    %v274 = vld [vmem:[%s2 + $0x98] sm:$0xff]
    %v275 = vld [vmem:[%s2 + $0xa0] sm:$0xff]
    %v276 = vld [vmem:[%s2 + $0xa8] sm:$0xff]
    %v277 = vld [vmem:[%s2 + $0xb0] sm:$0xff]
    %v278 = vld [vmem:[%s2 + $0xb8] sm:$0xff]
    %v279 = vld [vmem:[%s2 + $0xc0] sm:$0xff]
    %v280 = vld [vmem:[%s2 + $0xc8] sm:$0xff]
    %v281 = vld [vmem:[%s2 + $0xd0] sm:$0xff]
    %v282 = vld [vmem:[%s2 + $0xd8] sm:$0xff]
    %v283 = vld [vmem:[%s2 + $0xe0] sm:$0xff]
    %v284 = vld [vmem:[%s2 + $0xe8] sm:$0xff]
    %v285 = vld [vmem:[%s2 + $0xf0] sm:$0xff]
    %v286 = vld [vmem:[%s2 + $0xf8] sm:$0xff]
    %v287 = vld [vmem:[%s2 + $0x100] sm:$0xff]
    %v288 = vld [vmem:[%s2 + $0x108] sm:$0xff]
    %v289 = vld [vmem:[%s2 + $0x110] sm:$0xff]
    %v290 = vld [vmem:[%s2 + $0x118] sm:$0xff]
    %v291 = vld [vmem:[%s2 + $0x120] sm:$0xff]
    %v292 = vld [vmem:[%s2 + $0x128] sm:$0xff]
    %v293 = vld [vmem:[%s2 + $0x130] sm:$0xff]
    %v294 = vld [vmem:[%s2 + $0x138] sm:$0xff]
    %v295 = vld [vmem:[%s2 + $0x140] sm:$0xff]
    %v296 = vld [vmem:[%s2 + $0x148] sm:$0xff]
    %v297 = vld [vmem:[%s2 + $0x150] sm:$0xff]
    %v298 = vld [vmem:[%s2 + $0x158] sm:$0xff]
    %v299 = vld [vmem:[%s2 + $0x160] sm:$0xff]
    %v300 = vld [vmem:[%s2 + $0x168] sm:$0xff]
    %v301 = vld [vmem:[%s2 + $0x170] sm:$0xff]
    %v302 = vld [vmem:[%s2 + $0x178] sm:$0xff]
    %v303 = vld [vmem:[%s2 + $0x180] sm:$0xff]
    %v304 = vld [vmem:[%s2 + $0x188] sm:$0xff]
    %v305 = vld [vmem:[%s2 + $0x190] sm:$0xff]
    %v306 = vld [vmem:[%s2 + $0x198] sm:$0xff]
    %v307 = vld [vmem:[%s2 + $0x1a0] sm:$0xff]
    %v308 = vld [vmem:[%s2 + $0x1a8] sm:$0xff]
    %v309 = vld [vmem:[%s2 + $0x1b0] sm:$0xff]
    %v310 = vld [vmem:[%s2 + $0x1b8] sm:$0xff]
    %v311 = vld [vmem:[%s2 + $0x1c0] sm:$0xff]
    %v312 = vld [vmem:[%s2 + $0x1c8] sm:$0xff]
    %v313 = vld [vmem:[%s2 + $0x1d0] sm:$0xff]
    %v314 = vld [vmem:[%s2 + $0x1d8] sm:$0xff]
    %v315 = vld [vmem:[%s2 + $0x1e0] sm:$0xff]
    %v316 = vld [vmem:[%s2 + $0x1e8] sm:$0xff]
    %v317 = vld [vmem:[%s2 + $0x1f0] sm:$0xff]
    %v318 = vld [vmem:[%s2 + $0x1f8] sm:$0xff]
    %v319 = vld [vmem:[%s3] sm:$0x1]
    %v321 = vlaneseq
    %v322 = vshrl.u32 %v321, 7
    %v323 = vsub.s32 0, %v322
    %v324 = vrot.slane %v319, %v323
    %326 = vmatprep.subr.mxu0 0.0
    %327 = vmatpush1.msra.mxu0 %v270
    %328 = vmatprep.subr.mxu0 0.0
    %329 = vmatpush1.msra.mxu0 %v269
    %330 = vmatprep.subr.mxu0 0.0
    %331 = vmatpush1.msra.mxu0 %v268
    %332 = vmatprep.subr.mxu0 0.0
    %333 = vmatpush1.msra.mxu0 %v267
    %334 = vmatprep.subr.mxu0 0.0
    %335 = vmatpush1.msra.mxu0 %v266
    %336 = vmatprep.subr.mxu0 0.0
    %337 = vmatpush1.msra.mxu0 %v265
    %338 = vmatprep.subr.mxu0 0.0
    %339 = vmatpush1.msra.mxu0 %v264
    %340 = vmatprep.subr.mxu0 0.0
    %341 = vmatpush1.msra.mxu0 %v263
    %342 = vmatprep.subr.mxu0 0.0
    %343 = vmatpush1.msra.mxu0 %v262
    %344 = vmatprep.subr.mxu0 0.0
    %345 = vmatpush1.msra.mxu0 %v261
    %346 = vmatprep.subr.mxu0 0.0
    %347 = vmatpush1.msra.mxu0 %v260
    %348 = vmatprep.subr.mxu0 0.0
    %349 = vmatpush1.msra.mxu0 %v259
    %350 = vmatprep.subr.mxu0 0.0
    %351 = vmatpush1.msra.mxu0 %v258
    %352 = vmatprep.subr.mxu0 0.0
    %353 = vmatpush1.msra.mxu0 %v257
    %354 = vmatprep.subr.mxu0 0.0
    %355 = vmatpush1.msra.mxu0 %v256
    %356 = vmatprep.subr.mxu0 0.0
    %357 = vmatpush1.msra.mxu0 %v255
    %358 = vmatprep.subr.mxu0 0.0
    %359 = vmatpush2.msra.mxu0 %v286
    %360 = vmatprep.subr.mxu0 0.0
    %361 = vmatpush2.msra.mxu0 %v285
    %362 = vmatprep.subr.mxu0 0.0
    %363 = vmatpush2.msra.mxu0 %v284
    %364 = vmatprep.subr.mxu0 0.0
    %365 = vmatpush2.msra.mxu0 %v283
    %366 = vmatprep.subr.mxu0 0.0
    %367 = vmatpush2.msra.mxu0 %v282
    %368 = vmatprep.subr.mxu0 0.0
    %369 = vmatpush2.msra.mxu0 %v281
    %370 = vmatprep.subr.mxu0 0.0
    %371 = vmatpush2.msra.mxu0 %v280
    %372 = vmatprep.subr.mxu0 0.0
    %373 = vmatpush2.msra.mxu0 %v279
    %374 = vmatprep.subr.mxu0 0.0
    %375 = vmatpush2.msra.mxu0 %v278
    %376 = vmatprep.subr.mxu0 0.0
    %377 = vmatpush2.msra.mxu0 %v277
    %378 = vmatprep.subr.mxu0 0.0
    %379 = vmatpush2.msra.mxu0 %v276
    %380 = vmatprep.subr.mxu0 0.0
    %381 = vmatpush2.msra.mxu0 %v275
    %382 = vmatprep.subr.mxu0 0.0
    %383 = vmatpush2.msra.mxu0 %v274
    %384 = vmatprep.subr.mxu0 0.0
    %385 = vmatpush2.msra.mxu0 %v273
    %386 = vmatprep.subr.mxu0 0.0
    %387 = vmatpush2.msra.mxu0 %v272
    %388 = vmatprep.subr.mxu0 0.0
    %389 = vmatpush2.msra.mxu0 %v271
    %390 = vmatprep.mubr.f32.mxu0 %v182
    %391 = vmatmul.mubr.f32.gmra.mxu0 %v180
    %v392 = vpop.f32.mrf.mxu0
    %v393 = vadd.f32 %v324, %v392
    %v394 = vpop.f32.mrf.mxu0
    %395 = vdwg.mxu0
    %396 = vmatprep.subr.mxu0 0.0
    %397 = vmatpush1.msra.mxu0 %v302
    %398 = vmatprep.subr.mxu0 0.0
    %399 = vmatpush1.msra.mxu0 %v301
    %400 = vmatprep.subr.mxu0 0.0
    %401 = vmatpush1.msra.mxu0 %v300
    %402 = vmatprep.subr.mxu0 0.0
    %403 = vmatpush1.msra.mxu0 %v299
    %404 = vmatprep.subr.mxu0 0.0
    %405 = vmatpush1.msra.mxu0 %v298
    %406 = vmatprep.subr.mxu0 0.0
    %407 = vmatpush1.msra.mxu0 %v297
    %408 = vmatprep.subr.mxu0 0.0
    %409 = vmatpush1.msra.mxu0 %v296
    %410 = vmatprep.subr.mxu0 0.0
    %411 = vmatpush1.msra.mxu0 %v295
    %412 = vmatprep.subr.mxu0 0.0
    %413 = vmatpush1.msra.mxu0 %v294
    %414 = vmatprep.subr.mxu0 0.0
    %415 = vmatpush1.msra.mxu0 %v293
    %416 = vmatprep.subr.mxu0 0.0
    %417 = vmatpush1.msra.mxu0 %v292
    %418 = vmatprep.subr.mxu0 0.0
    %419 = vmatpush1.msra.mxu0 %v291
    %420 = vmatprep.subr.mxu0 0.0
    %421 = vmatpush1.msra.mxu0 %v290
    %422 = vmatprep.subr.mxu0 0.0
    %423 = vmatpush1.msra.mxu0 %v289
    %424 = vmatprep.subr.mxu0 0.0
    %425 = vmatpush1.msra.mxu0 %v288
    %426 = vmatprep.subr.mxu0 0.0
    %427 = vmatpush1.msra.mxu0 %v287
    %428 = vmatprep.subr.mxu0 0.0
    %429 = vmatpush2.msra.mxu0 %v318
    %430 = vmatprep.subr.mxu0 0.0
    %431 = vmatpush2.msra.mxu0 %v317
    %432 = vmatprep.subr.mxu0 0.0
    %433 = vmatpush2.msra.mxu0 %v316
    %434 = vmatprep.subr.mxu0 0.0
    %435 = vmatpush2.msra.mxu0 %v315
    %436 = vmatprep.subr.mxu0 0.0
    %437 = vmatpush2.msra.mxu0 %v314
    %438 = vmatprep.subr.mxu0 0.0
    %439 = vmatpush2.msra.mxu0 %v313
    %440 = vmatprep.subr.mxu0 0.0
    %441 = vmatpush2.msra.mxu0 %v312
    %442 = vmatprep.subr.mxu0 0.0
    %443 = vmatpush2.msra.mxu0 %v311
    %444 = vmatprep.subr.mxu0 0.0
    %445 = vmatpush2.msra.mxu0 %v310
    %446 = vmatprep.subr.mxu0 0.0
    %447 = vmatpush2.msra.mxu0 %v309
    %448 = vmatprep.subr.mxu0 0.0
    %449 = vmatpush2.msra.mxu0 %v308
    %450 = vmatprep.subr.mxu0 0.0
    %451 = vmatpush2.msra.mxu0 %v307
    %452 = vmatprep.subr.mxu0 0.0
    %453 = vmatpush2.msra.mxu0 %v306
    %454 = vmatprep.subr.mxu0 0.0
    %455 = vmatpush2.msra.mxu0 %v305
    %456 = vmatprep.subr.mxu0 0.0
    %457 = vmatpush2.msra.mxu0 %v304
    %458 = vmatprep.subr.mxu0 0.0
    %459 = vmatpush2.msra.mxu0 %v303
    %460 = vmatprep.mubr.f32.mxu0 %v253
    %461 = vmatmul.mubr.f32.gmra.mxu0 %v251
    %v462 = vpop.f32.mrf.mxu0
    %v463 = vadd.f32 %v393, %v462
    %v464 = vpop.f32.mrf.mxu0
    %465 = vdwg.mxu0
    %vm466 = vcmask 58368
    %467 = vst.msk [vmem:[#allocation2] sm:$0x3] %vm466, %v463
    // Predicated region
    $region18: #{tpu_custom_call.1} parent=1 // pred_check
      _
    $region19: #{tpu_custom_call.1} parent=1 // pred_check_branch
      %469 = sbr.rel (0) target = $region21
    $region20: #{tpu_custom_call.1} parent=1 // pred_region
      %s471 = ssub.s32 32, 32
      %472 = vsyncadd [#allocation3], %s471
      %s474 = sshll.u32 [#allocation2], 4
      %s475 = int_to_ptr.vmem [resolvable:$true] %s474
      %477 = dma.vmem_to_hbm [thread:$0]  %s475, 32, %s4, [#allocation3]
    $region21: #{tpu_custom_call.1} parent=1 // pred_fallthru
      _
    // Predicated region
    $region22: #{tpu_custom_call.1} parent=1 // pred_check
      _
    $region23: #{tpu_custom_call.1} parent=1 // pred_check_branch
      %479 = sbr.rel (0) target = $region25
    $region24: #{tpu_custom_call.1} parent=1 // pred_region
      %480 = dma.done [#allocation3], 32
    $region25: #{tpu_custom_call.1} parent=1 // pred_fallthru
      _
    %481 = vsyncpa [#allocation3], 1

</llo_original>
